<compile_context>
chip_gen: v7x
topology: tpu7x:2x2x1
jax: 0.10.0
libtpu: 0.0.40
codegen_flags: <defaults>
</compile_context>

<pallas_src>
import jax
import jax.numpy as jnp
from jax.experimental import pallas as pl
from jax.experimental.pallas import tpu as pltpu


def _film_kernel(x_ref, cond_ref, w_ref, b_ref, o_ref):
    in_pad = o_ref.shape[1]
    c = cond_ref[...].astype(jnp.float32)

    # Mish(c) = c * tanh(softplus(c)); rewritten with a single exp:
    #   tanh(log(1 + e^c)) = ((1+e^c)^2 - 1) / ((1+e^c)^2 + 1)
    e = jnp.exp(jnp.minimum(c, 20.0))
    w = (1.0 + e) * (1.0 + e)
    h = jnp.where(c > 20.0, c, c * (w - 1.0) * pl.reciprocal(w + 1.0, approx=True))

    # Single fused MXU matmul against packed [W_scale | W_bias]; f32 accumulation.
    h = h.astype(w_ref.dtype)  # bf16 weights => bf16 MXU operands (v6e/v7x)
    sb = jnp.dot(h, w_ref[...], preferred_element_type=jnp.float32)
    sb = sb + b_ref[...].astype(jnp.float32)

    scale = sb[:, :in_pad]          # 128-aligned static split
    bias = sb[:, in_pad:]
    o_ref[...] = (scale * x_ref[...].astype(jnp.float32) + bias).astype(o_ref.dtype)


def pack_film_params(W, b, in_dim, *, weight_dtype=jnp.float32, lane=128):
    """Pre-pack nn.Linear(cond_dim, 2*in_dim) params once (module-init time).

    De-interleaves the (scale, bias) rows implied by nn.Unflatten(-1, (-1, 2)),
    transposes to (cond_dim, in_dim), zero-pads the feature axis to a multiple of
    128 and concatenates [W_scale | W_bias] so the kernel runs one lane-dense
    matmul and splits the result on a lane-tile boundary.
    """
    two_in, cond_dim = W.shape
    assert two_in == 2 * in_dim
    in_pad = ((in_dim + lane - 1) // lane) * lane

    W_scale = jnp.transpose(W[0::2, :])   # (cond_dim, in_dim)
    W_bias = jnp.transpose(W[1::2, :])    # (cond_dim, in_dim)

    Wp = jnp.zeros((cond_dim, 2 * in_pad), weight_dtype)
    Wp = Wp.at[:, :in_dim].set(W_scale.astype(weight_dtype))
    Wp = Wp.at[:, in_pad:in_pad + in_dim].set(W_bias.astype(weight_dtype))

    bp = jnp.zeros((1, 2 * in_pad), jnp.float32)
    bp = bp.at[0, :in_dim].set(b[0::2].astype(jnp.float32))
    bp = bp.at[0, in_pad:in_pad + in_dim].set(b[1::2].astype(jnp.float32))
    return Wp, bp


def film_embeddings(x, cond, Wp, bp, *, block_b=256, interpret=False):
    """x: (B, in_dim), cond: (B, cond_dim), Wp/bp: packed via pack_film_params."""
    B, in_dim = x.shape
    Bc, cond_dim = cond.shape
    assert Bc == B
    two_in_pad = Wp.shape[1]
    in_pad = two_in_pad // 2
    assert in_dim <= in_pad

    # Batch tile: multiple of 8 sublanes, divides the (padded) batch.
    TB = min(block_b, max(8, B))
    Bp = ((B + TB - 1) // TB) * TB

    # Lane-dense, tile-aligned staging (zero-pad rows / features). No-op copies
    # when the caller already provides padded shapes.
    if (Bp, in_pad) != (B, in_dim):
        x_in = jnp.zeros((Bp, in_pad), x.dtype).at[:B, :in_dim].set(x)
    else:
        x_in = x
    cond_in = cond if Bp == B else jnp.zeros((Bp, cond_dim), cond.dtype).at[:B, :].set(cond)

    grid = (Bp // TB,)

    # VMEM budget: double-buffered x / cond / out tiles + resident packed weights.
    blk_bytes = (2 * (TB * in_pad * x_in.dtype.itemsize
                      + TB * cond_dim * cond_in.dtype.itemsize
                      + TB * in_pad * x.dtype.itemsize)
                 + cond_dim * two_in_pad * Wp.dtype.itemsize
                 + two_in_pad * 4)
    vmem_limit = int(min(48 * 1024 * 1024, max(2 * blk_bytes, 16 * 1024 * 1024)))

    out = pl.pallas_call(
        _film_kernel,
        out_shape=jax.ShapeDtypeStruct((Bp, in_pad), x.dtype),
        grid_spec=pltpu.PrefetchScalarGridSpec(
            num_scalar_prefetch=0,
            grid=grid,
            in_specs=[
                pl.BlockSpec((TB, in_pad), lambda i: (i, 0)),            # x tile
                pl.BlockSpec((TB, cond_dim), lambda i: (i, 0)),          # cond tile
                pl.BlockSpec((cond_dim, two_in_pad), lambda i: (0, 0)),  # packed W (VMEM-resident)
                pl.BlockSpec((1, two_in_pad), lambda i: (0, 0)),         # packed b (VMEM-resident)
            ],
            out_specs=pl.BlockSpec((TB, in_pad), lambda i: (i, 0)),
        ),
        compiler_params=pltpu.CompilerParams(
            dimension_semantics=("parallel",),
            vmem_limit_bytes=vmem_limit),
        interpret=interpret,
    )(x_in, cond_in, Wp, bp)

    return out[:B, :in_dim]


def film_reference(x, cond, W, b):
    """Pure-JAX reference mirroring the PyTorch forward."""
    h = cond * jnp.tanh(jax.nn.softplus(cond))        # Mish
    y = h @ W.T + b                                    # (B, 2*in_dim)
    y = y.reshape(y.shape[0], -1, 2)                   # Unflatten(-1, (-1, 2))
    scale = y[:, :, 0]
    bias = y[:, :, 1]
    return scale * x + bias


if __name__ == "__main__":
    # NOTE: at this toy size the call is pure fixed overhead; in a real model,
    # batch many rows per call or fuse FiLM into the adjacent kernel.
    B, in_dim, cond_dim = 8, 32, 16

    key = jax.random.PRNGKey(0)
    kx, kc, kw, kb = jax.random.split(key, 4)

    x = jax.random.normal(kx, (B, in_dim), dtype=jnp.float32)
    cond = jax.random.normal(kc, (B, cond_dim), dtype=jnp.float32)

    # nn.Linear(cond_dim, 2*in_dim) init: uniform(-1/sqrt(cond_dim), 1/sqrt(cond_dim)).
    bound = 1.0 / (cond_dim ** 0.5)
    W = jax.random.uniform(kw, (2 * in_dim, cond_dim), jnp.float32, -bound, bound)
    b = jax.random.uniform(kb, (2 * in_dim,), jnp.float32, -bound, bound)

    ref = film_reference(x, cond, W, b)

    # f32-weight path (all chips). Tolerance loosened slightly for the approx
    # reciprocal in the exp-only Mish form.
    Wp, bp = pack_film_params(W, b, in_dim)                      # packed ONCE
    out = jax.block_until_ready(film_embeddings(x, cond, Wp, bp))
    assert out.shape == (B, in_dim)
    err = jnp.max(jnp.abs(out - ref))
    assert jnp.allclose(out, ref, atol=1e-2, rtol=1e-2), f"f32 path max err {err}"

    # bf16 MXU-operand path (v6e/v7x); f32 accumulation via preferred_element_type.
    Wp16, bp16 = pack_film_params(W, b, in_dim, weight_dtype=jnp.bfloat16)
    out16 = jax.block_until_ready(film_embeddings(x, cond, Wp16, bp16))
    err16 = jnp.max(jnp.abs(out16 - ref))
    assert jnp.allclose(out16, ref, atol=6e-2, rtol=6e-2), f"bf16 path max err {err16}"

    print("KERNEL_OK")
</pallas_src>

<mosaic_0001>
module attributes {stable_mosaic.version = 11 : i64} {
  func.func @_film_kernel(%arg0: i32, %arg1: memref<8x128xf32, #tpu.memory_space<vmem>>, %arg2: memref<8x16xf32, #tpu.memory_space<vmem>>, %arg3: memref<16x256xf32, #tpu.memory_space<vmem>>, %arg4: memref<1x256xf32, #tpu.memory_space<vmem>>, %arg5: memref<8x128xf32, #tpu.memory_space<vmem>>) attributes {dimension_semantics = [#tpu.dimension_semantics<parallel>], iteration_bounds = array<i64: 1>, scalar_prefetch = 0 : i64, scratch_operands = 0 : i64, tpu.core_type = #tpu.core_type<tc>, window_params = [{transform_indices = @transform_0, window_bounds = array<i64: 8, 128>}, {transform_indices = @transform_1, window_bounds = array<i64: 8, 16>}, {pipeline_mode = #tpu.pipeline_mode<synchronous>, transform_indices = @transform_2, window_bounds = array<i64: 16, 256>}, {pipeline_mode = #tpu.pipeline_mode<synchronous>, transform_indices = @transform_3, window_bounds = array<i64: 1, 256>}, {transform_indices = @transform_4, window_bounds = array<i64: 8, 128>}]} {
    %c0 = arith.constant 0 : index
    %c0_0 = arith.constant 0 : index
    %0 = vector.load %arg2[%c0, %c0_0] : memref<8x16xf32, #tpu.memory_space<vmem>>, vector<8x16xf32>
    %cst = arith.constant 2.000000e+01 : f32
    %1 = vector.broadcast %cst : f32 to vector<8x16xf32>
    %2 = arith.minimumf %0, %1 : vector<8x16xf32>
    %3 = math.exp %2 : vector<8x16xf32>
    %cst_1 = arith.constant 1.000000e+00 : f32
    %4 = vector.broadcast %cst_1 : f32 to vector<8x16xf32>
    %5 = arith.addf %4, %3 : vector<8x16xf32>
    %cst_2 = arith.constant 1.000000e+00 : f32
    %6 = vector.broadcast %cst_2 : f32 to vector<8x16xf32>
    %7 = arith.addf %6, %3 : vector<8x16xf32>
    %8 = arith.mulf %5, %7 : vector<8x16xf32>
    %cst_3 = arith.constant 2.000000e+01 : f32
    %9 = vector.broadcast %cst_3 : f32 to vector<8x16xf32>
    %10 = arith.cmpf ogt, %0, %9 : vector<8x16xf32>
    %cst_4 = arith.constant 1.000000e+00 : f32
    %11 = vector.broadcast %cst_4 : f32 to vector<8x16xf32>
    %12 = arith.subf %8, %11 : vector<8x16xf32>
    %13 = arith.mulf %0, %12 : vector<8x16xf32>
    %cst_5 = arith.constant 1.000000e+00 : f32
    %14 = vector.broadcast %cst_5 : f32 to vector<8x16xf32>
    %15 = arith.addf %8, %14 : vector<8x16xf32>
    %16 = tpu.reciprocal %15 {approx = true} : vector<8x16xf32> -> vector<8x16xf32>
    %17 = arith.mulf %13, %16 : vector<8x16xf32>
    %18 = arith.select %10, %0, %17 : vector<8x16xi1>, vector<8x16xf32>
    %c0_6 = arith.constant 0 : index
    %c0_7 = arith.constant 0 : index
    %19 = vector.load %arg3[%c0_6, %c0_7] : memref<16x256xf32, #tpu.memory_space<vmem>>, vector<16x256xf32>
    %cst_8 = arith.constant dense<0.000000e+00> : vector<8x256xf32>
    %20 = tpu.matmul %18, %19, %cst_8 {dimension_numbers = #tpu.dot_dimension_numbers<[1], [0], [0], [1], [0, 0, 1, 1], [], []>} : vector<8x16xf32>, vector<16x256xf32>, vector<8x256xf32> -> vector<8x256xf32>
    %c0_9 = arith.constant 0 : index
    %c0_10 = arith.constant 0 : index
    %21 = vector.load %arg4[%c0_9, %c0_10] : memref<1x256xf32, #tpu.memory_space<vmem>>, vector<1x256xf32>
    %22 = vector.broadcast %21 : vector<1x256xf32> to vector<8x256xf32>
    %23 = arith.addf %20, %22 : vector<8x256xf32>
    %24 = vector.extract_strided_slice %23 {offsets = [0, 0], sizes = [8, 128], strides = [1, 1]} : vector<8x256xf32> to vector<8x128xf32>
    %25 = vector.extract_strided_slice %23 {offsets = [0, 128], sizes = [8, 128], strides = [1, 1]} : vector<8x256xf32> to vector<8x128xf32>
    %c0_11 = arith.constant 0 : index
    %c0_12 = arith.constant 0 : index
    %26 = vector.load %arg1[%c0_11, %c0_12] : memref<8x128xf32, #tpu.memory_space<vmem>>, vector<8x128xf32>
    %27 = arith.mulf %24, %26 : vector<8x128xf32>
    %28 = arith.addf %27, %25 : vector<8x128xf32>
    %c0_13 = arith.constant 0 : index
    %c0_14 = arith.constant 0 : index
    %29 = vector.load %arg5[%c0_13, %c0_14] : memref<8x128xf32, #tpu.memory_space<vmem>>, vector<8x128xf32>
    tpu.vector_store %arg5[%c0_13, %c0_14], %28 {strides = array<i32>} : memref<8x128xf32, #tpu.memory_space<vmem>>, vector<8x128xf32>,
    return
  }
  func.func @transform_0(%arg0: i32) -> (i32, i32) {
    %c0_i32 = arith.constant 0 : i32
    %c0_i32_0 = arith.constant 0 : i32
    return %arg0, %c0_i32 : i32, i32
  }
  func.func @transform_1(%arg0: i32) -> (i32, i32) {
    %c0_i32 = arith.constant 0 : i32
    %c0_i32_0 = arith.constant 0 : i32
    return %arg0, %c0_i32 : i32, i32
  }
  func.func @transform_2(%arg0: i32) -> (i32, i32) {
    %c0_i32 = arith.constant 0 : i32
    %c0_i32_0 = arith.constant 0 : i32
    %c0_i32_1 = arith.constant 0 : i32
    return %c0_i32, %c0_i32_0 : i32, i32
  }
  func.func @transform_3(%arg0: i32) -> (i32, i32) {
    %c0_i32 = arith.constant 0 : i32
    %c0_i32_0 = arith.constant 0 : i32
    %c0_i32_1 = arith.constant 0 : i32
    return %c0_i32, %c0_i32_0 : i32, i32
  }
  func.func @transform_4(%arg0: i32) -> (i32, i32) {
    %c0_i32 = arith.constant 0 : i32
    %c0_i32_0 = arith.constant 0 : i32
    return %arg0, %c0_i32 : i32, i32
  }
}

</mosaic_0001>

<llo_original>
// kernel: tpu_custom_call.1
$region0: #{tpu_custom_call.1}
  #allocation0 [shape = 'u32[]', space=smem, size = 0x4, offset = 0x4, fixed_abs, tag = 'smem constant byte address 0x4 - core index']
  #allocation1 [shape = 'u32[144,128]{1,0:T(1,128)}', space=vmem, size = 0x12000, scoped, tag = 'internal scratch']
  %s0 = inlined_call_operand.hbm [shape: f32[8,128], index: 0, kind: input, shape index: {}]
  %s1 = inlined_call_operand.hbm [shape: f32[8,16], index: 1, kind: input, shape index: {}]
  %s2 = inlined_call_operand.hbm [shape: f32[16,256], index: 2, kind: input, shape index: {}]
  %s3 = inlined_call_operand.vmem [shape: f32[1,256], index: 3, kind: input, shape index: {}]
  %s4 = inlined_call_operand.hbm [shape: f32[8,128], index: 4, kind: output, shape index: {}]
  %s5 = sld [smem:[#allocation0]]
  $region38: #{tpu_custom_call.1} parent=0
    _
  %s7 = ssub.s32 1, %s5
  %s8 = scalar_select 0, %s7, %s5
  $region1: #{tpu_custom_call.1} parent=0
    #allocation2 [shape = 'u8[4096]{0}', space=vmem, size = 0x1000, scoped, tag = 'input window, operand 0, single buffered']
    #allocation3 [shape = 's32[1]{0}', space=sflag, size = 0x4, scoped, tag = 'scoped memory for tpu_custom_call.1']
    #allocation4 [shape = 's32[1]{0}', space=sflag, size = 0x4, scoped, tag = 'scoped memory for tpu_custom_call.1']
    #allocation5 [shape = 'u8[4096]{0}', space=vmem, size = 0x1000, scoped, tag = 'input window, operand 1, single buffered']
    #allocation6 [shape = 's32[1]{0}', space=sflag, size = 0x4, scoped, tag = 'scoped memory for tpu_custom_call.1']
    #allocation7 [shape = 'u8[16384]{0}', space=vmem, size = 0x4000, scoped, tag = 'input window, operand 2, single buffered']
    #allocation8 [shape = 'u8[4096]{0}', space=vmem, size = 0x1000, scoped, tag = 'output window, operand 0, single buffered']
    %9 = vsyncpa [#allocation3], 0
    %10 = vsyncpa [#allocation6], 0
    %11 = vsyncpa [#allocation4], 0
    // Predicated region
    $region2: #{tpu_custom_call.1} parent=1 // pred_check
      _
    $region3: #{tpu_custom_call.1} parent=1 // pred_check_branch
      %13 = sbr.rel (0) target = $region5
    $region4: #{tpu_custom_call.1} parent=1 // pred_region
      %s15 = ssub.s32 128, 128
      %16 = vsyncadd [#allocation3], %s15
      %s18 = sshll.u32 [#allocation2], 4
      %s19 = int_to_ptr.vmem [resolvable:$true] %s18
      %21 = dma.hbm_to_vmem [thread:$0]  %s0, 128, %s19, [#allocation3]
    $region5: #{tpu_custom_call.1} parent=1 // pred_fallthru
      _
    // Predicated region
    $region6: #{tpu_custom_call.1} parent=1 // pred_check
      _
    $region7: #{tpu_custom_call.1} parent=1 // pred_check_branch
      %23 = sbr.rel (0) target = $region9
    $region8: #{tpu_custom_call.1} parent=1 // pred_region
      %s25 = ssub.s32 128, 128
      %26 = vsyncadd [#allocation6], %s25
      %s28 = sshll.u32 [#allocation5], 4
      %s29 = int_to_ptr.vmem [resolvable:$true] %s28
      %31 = dma.hbm_to_vmem [thread:$0]  %s1, 128, %s29, [#allocation6]
    $region9: #{tpu_custom_call.1} parent=1 // pred_fallthru
      _
    // Predicated region
    $region10: #{tpu_custom_call.1} parent=1 // pred_check
      _
    $region11: #{tpu_custom_call.1} parent=1 // pred_check_branch
      %33 = sbr.rel (0) target = $region13
    $region12: #{tpu_custom_call.1} parent=1 // pred_region
      %s35 = ssub.s32 512, 512
      %36 = vsyncadd [#allocation6], %s35
      %s37 = sshll.u32 [#allocation7], 4
      %s38 = int_to_ptr.vmem [resolvable:$true] %s37
      %43 = dma.hbm_to_vmem [thread:$0]  %s2, 512, %s38, [#allocation6], 256, 256, 16
    $region13: #{tpu_custom_call.1} parent=1 // pred_fallthru
      _
    // Predicated region
    $region14: #{tpu_custom_call.1} parent=1 // pred_check
      _
    $region15: #{tpu_custom_call.1} parent=1 // pred_check_branch
      %45 = sbr.rel (0) target = $region17
    $region16: #{tpu_custom_call.1} parent=1 // pred_region
      _
    $region17: #{tpu_custom_call.1} parent=1 // pred_fallthru
      _
    // Predicated region
    $region18: #{tpu_custom_call.1} parent=1 // pred_check
      _
    $region19: #{tpu_custom_call.1} parent=1 // pred_check_branch
      %47 = sbr.rel (0) target = $region21
    $region20: #{tpu_custom_call.1} parent=1 // pred_region
      %48 = dma.done [#allocation3], 128
    $region21: #{tpu_custom_call.1} parent=1 // pred_fallthru
      _
    // Predicated region
    $region22: #{tpu_custom_call.1} parent=1 // pred_check
      _
    $region23: #{tpu_custom_call.1} parent=1 // pred_check_branch
      %50 = sbr.rel (0) target = $region25
    $region24: #{tpu_custom_call.1} parent=1 // pred_region
      %51 = dma.done [#allocation6], 128
    $region25: #{tpu_custom_call.1} parent=1 // pred_fallthru
      _
    // Predicated region
    $region26: #{tpu_custom_call.1} parent=1 // pred_check
      _
    $region27: #{tpu_custom_call.1} parent=1 // pred_check_branch
      %53 = sbr.rel (0) target = $region29
    $region28: #{tpu_custom_call.1} parent=1 // pred_region
      %54 = dma.done [#allocation6], 512
    $region29: #{tpu_custom_call.1} parent=1 // pred_fallthru
      _
    %v55 = vld [vmem:[#allocation5] sm:$0xff]
    %v56 = vmin.f32 %v55, 20.0
    %v57 = vmul.f32 %v56, 1.442695
    %v58 = vpow.pop %v57
    %v59 = vadd.f32 %v58, 1.0
    %v60 = vmul.f32 %v59, %v59
    %vm61 = vcmp.gt.f32.partialorder %v55, 20.0
    %v62 = vsub.f32 %v60, 1.0
    %v63 = vmul.f32 %v55, %v62
    %v64 = vadd.f32 %v60, 1.0
    %v65 = vrcp.pop %v64
    %v66 = vmul.f32 %v63, %v65
    %v67 = vsel %vm61, %v55, %v66
    %v68 = vld [vmem:[#allocation7] sm:$0xff]
    %v69 = vld [vmem:[#allocation7 + $0x8] sm:$0xff]
    %v70 = vld [vmem:[#allocation7 + $0x10] sm:$0xff]
    %v71 = vld [vmem:[#allocation7 + $0x18] sm:$0xff]
    %v72 = vld [vmem:[%s3] sm:$0x3]
    %v74 = vlaneseq
    %v75 = vshrl.u32 %v74, 7
    %v76 = vsub.s32 0, %v75
    %v77 = vrot.slane %v72, %v76
    %v78 = vlaneseq
    %v79 = vshrl.u32 %v78, 7
    %v80 = vsub.s32 1, %v79
    %v81 = vrot.slane %v72, %v80
    %vm84 = vcmask 130048
    %v86 = vsel %vm84, %v67, 0
    %88 = vmatprep.subr.mxu0 %v69
    %89 = vmatpush1.msra.mxu0 %v68
    %90 = vmatprep.subr.mxu0 %v71
    %91 = vmatpush1.msra.mxu0 %v70
    %92 = vmatprep.subr.mxu0 0.0
    %93 = vmatpush1.msra.mxu0 0.0
    %94 = vmatprep.subr.mxu0 0.0
    %95 = vmatpush1.msra.mxu0 0.0
    %96 = vmatprep.subr.mxu0 0.0
    %97 = vmatpush1.msra.mxu0 0.0
    %98 = vmatprep.subr.mxu0 0.0
    %99 = vmatpush1.msra.mxu0 0.0
    %100 = vmatprep.subr.mxu0 0.0
    %101 = vmatpush1.msra.mxu0 0.0
    %102 = vmatprep.subr.mxu0 0.0
    %103 = vmatpush1.msra.mxu0 0.0
    %104 = vmatprep.subr.mxu0 0.0
    %105 = vmatpush1.msra.mxu0 0.0
    %106 = vmatprep.subr.mxu0 0.0
    %107 = vmatpush1.msra.mxu0 0.0
    %108 = vmatprep.subr.mxu0 0.0
    %109 = vmatpush1.msra.mxu0 0.0
    %110 = vmatprep.subr.mxu0 0.0
    %111 = vmatpush1.msra.mxu0 0.0
    %112 = vmatprep.subr.mxu0 0.0
    %113 = vmatpush1.msra.mxu0 0.0
    %114 = vmatprep.subr.mxu0 0.0
    %115 = vmatpush1.msra.mxu0 0.0
    %116 = vmatprep.subr.mxu0 0.0
    %117 = vmatpush1.msra.mxu0 0.0
    %118 = vmatprep.subr.mxu0 0.0
    %119 = vmatpush1.msra.mxu0 0.0
    %120 = vmatprep.subr.mxu0 0.0
    %121 = vmatpush1.msra.mxu0 0.0
    %122 = vmatprep.subr.mxu0 0.0
    %123 = vmatpush1.msra.mxu0 0.0
    %124 = vmatprep.subr.mxu0 0.0
    %125 = vmatpush1.msra.mxu0 0.0
    %126 = vmatprep.subr.mxu0 0.0
    %127 = vmatpush1.msra.mxu0 0.0
    %128 = vmatprep.subr.mxu0 0.0
    %129 = vmatpush1.msra.mxu0 0.0
    %130 = vmatprep.subr.mxu0 0.0
    %131 = vmatpush1.msra.mxu0 0.0
    %132 = vmatprep.subr.mxu0 0.0
    %133 = vmatpush1.msra.mxu0 0.0
    %134 = vmatprep.subr.mxu0 0.0
    %135 = vmatpush1.msra.mxu0 0.0
    %136 = vmatprep.subr.mxu0 0.0
    %137 = vmatpush1.msra.mxu0 0.0
    %138 = vmatprep.subr.mxu0 0.0
    %139 = vmatpush1.msra.mxu0 0.0
    %140 = vmatprep.subr.mxu0 0.0
    %141 = vmatpush1.msra.mxu0 0.0
    %142 = vmatprep.subr.mxu0 0.0
    %143 = vmatpush1.msra.mxu0 0.0
    %144 = vmatprep.subr.mxu0 0.0
    %145 = vmatpush1.msra.mxu0 0.0
    %146 = vmatprep.subr.mxu0 0.0
    %147 = vmatpush1.msra.mxu0 0.0
    %148 = vmatprep.subr.mxu0 0.0
    %149 = vmatpush1.msra.mxu0 0.0
    %150 = vmatprep.subr.mxu0 0.0
    %151 = vmatpush1.msra.mxu0 0.0
    %152 = vmatprep.mubr.f32.mxu0 0.0
    %153 = vmatmul.mubr.f32.gmra.mrb[0].mxu0 %v86
    %v154 = vpop.f32.mrb[0].mxu0
    %v155 = vadd.f32 %v77, %v154
    %v156 = vpop.f32.mrb[0].mxu0
    %v157 = vadd.f32 %v81, %v156
    %158 = vdwg.mxu0
    %v159 = vld [vmem:[#allocation2] sm:$0xff]
    %v160 = vmul.f32 %v155, %v159
    %v161 = vadd.f32 %v160, %v157
    %162 = vst [vmem:[#allocation8] sm:$0xff] %v161
    // Predicated region
    $region30: #{tpu_custom_call.1} parent=1 // pred_check
      _
    $region31: #{tpu_custom_call.1} parent=1 // pred_check_branch
      %164 = sbr.rel (0) target = $region33
    $region32: #{tpu_custom_call.1} parent=1 // pred_region
      %s166 = ssub.s32 128, 128
      %167 = vsyncadd [#allocation4], %s166
      %s169 = sshll.u32 [#allocation8], 4
      %s170 = int_to_ptr.vmem [resolvable:$true] %s169
      %172 = dma.vmem_to_hbm [thread:$0]  %s170, 128, %s4, [#allocation4]
    $region33: #{tpu_custom_call.1} parent=1 // pred_fallthru
      _
    // Predicated region
    $region34: #{tpu_custom_call.1} parent=1 // pred_check
      _
    $region35: #{tpu_custom_call.1} parent=1 // pred_check_branch
      %174 = sbr.rel (0) target = $region37
    $region36: #{tpu_custom_call.1} parent=1 // pred_region
      %175 = dma.done [#allocation4], 128
    $region37: #{tpu_custom_call.1} parent=1 // pred_fallthru
      _
    %176 = vsyncpa [#allocation3], 1
    %177 = vsyncpa [#allocation6], 1
    %178 = vsyncpa [#allocation4], 1

</llo_original>
